<compile_context>
chip_gen: v6e
topology: v6e:2x2x1
jax: 0.10.0
libtpu: 0.0.40
codegen_flags: <defaults>
</compile_context>

<pallas_src>
import functools

import jax
import jax.numpy as jnp
from jax.experimental import pallas as pl
from jax.experimental.pallas import tpu as pltpu

LANES = 128
SUBLANES = 8
ACC_ROWS_TARGET = 256          # rows in the resident f32 accumulator block


def _round_up(x, m):
    return (x + m - 1) // m * m


def _device_kind():
    try:
        devs = jax.devices()
        return devs[0].device_kind.lower() if devs else ""
    except Exception:  # pragma: no cover - defensive
        return ""


def _mse_partial_kernel(x_ref, t_ref, acc_ref, *,
                        rows, tile_rows, acc_rows, blocks_per_split):
    """Accumulate sum((x - t)^2) for this block into a resident (acc_rows,128) slab."""
    c = pl.program_id(0)   # split index ("parallel"; megacore on multi-TC chips)
    i = pl.program_id(1)   # block index within the split ("arbitrary" reduction)

    @pl.when(i == 0)
    def _init():
        acc_ref[...] = jnp.zeros_like(acc_ref)

    # Logical (unclamped) first row of this block.  Rows at/after `rows` are
    # edge-padding garbage or belong to a clamped out-of-range block and must
    # contribute zero.
    row0 = (c * blocks_per_split + i) * tile_rows
    nchunks = tile_rows // acc_rows

    def accumulate(masked):
        for j in range(nchunks):
            lo = j * acc_rows
            hi = lo + acc_rows
            d = (x_ref[lo:hi, :].astype(jnp.float32)
                 - t_ref[lo:hi, :].astype(jnp.float32))
            if masked:
                row_ids = (row0 + lo) + jax.lax.broadcasted_iota(
                    jnp.int32, (acc_rows, LANES), 0)
                d = jnp.where(row_ids < rows, d, 0.0)
            acc_ref[...] += (d * d)[None]

    # Interior blocks: unmasked fast path (no iota / compare / select).
    @pl.when(row0 + tile_rows <= rows)
    def _fast():
        accumulate(masked=False)

    # Partial tail block or fully clamped block: masked path.
    @pl.when(row0 + tile_rows > rows)
    def _tail():
        accumulate(masked=True)


def content_loss(x, target, *, tile_rows=None):
    """Returns (x, loss) where loss = mean((x - target)**2).

    Mirrors ContentLoss.forward: the module passes x through unchanged and
    stashes the MSE against a fixed target.
    # TODO(synk): the module's stateful `self.loss` attribute has no Pallas
    # equivalent; the loss is returned as a second output instead.
    """
    assert x.shape == target.shape, "x and target must have the same shape"
    n_elems = x.size
    itemsize = jnp.dtype(x.dtype).itemsize
    # Minimum sublane multiple depends on dtype packing: f32 -> 8, bf16 -> 16,
    # int8 / fp8 -> 32.
    sub = SUBLANES * max(1, 4 // max(1, itemsize))

    # Generation-aware tuning.
    kind = _device_kind()
    if "v7" in kind or "7x" in kind:
        target_rows, nsplit = 8192, 2     # 2 TensorCores: shard the reduction
    elif "v6" in kind:
        target_rows, nsplit = 8192, 1     # 4 MiB f32 blocks, 16 MiB double-buffered
    else:  # v5e / unknown: conservative
        target_rows, nsplit = 4096, 1
    if tile_rows is not None:
        target_rows = tile_rows

    x_flat = x.reshape(-1)
    t_flat = target.reshape(-1)

    rows = n_elems // LANES
    if rows < sub:
        # Tiny remnant (< one sublane tile): handle entirely in the wrapper.
        rows = 0
    kernel_elems = rows * LANES
    tail_elems = n_elems - kernel_elems

    if tail_elems:
        xt = x_flat[kernel_elems:].astype(jnp.float32)
        tt = t_flat[kernel_elems:].astype(jnp.float32)
        tail_sum = jnp.sum((xt - tt) ** 2)
    else:
        tail_sum = jnp.zeros((), jnp.float32)

    if rows == 0:
        return x, tail_sum / jnp.float32(n_elems)

    if tail_elems:
        # Rare path (size not divisible by 128): kernel runs on the 128-aligned
        # prefix only; no whole-array pad of both tensors.
        x2d = x_flat[:kernel_elems].reshape(rows, LANES)
        t2d = t_flat[:kernel_elems].reshape(rows, LANES)
    else:
        # Common path: pure reshape, no copies.
        x2d = x_flat.reshape(rows, LANES)
        t2d = t_flat.reshape(rows, LANES)

    # Tile selection. Blocks always start inside the array; the (at most one)
    # partial final block is handled by the masked path in the kernel.
    if rows >= ACC_ROWS_TARGET:
        tr = min(_round_up(target_rows, ACC_ROWS_TARGET),
                 (rows // ACC_ROWS_TARGET) * ACC_ROWS_TARGET)
        acc_rows = ACC_ROWS_TARGET
    else:
        # Small inputs: one block covering everything when sublane-aligned,
        # else stream sub-row blocks (last one masked).
        tr = rows if rows % sub == 0 else sub
        acc_rows = tr

    total_blocks = pl.cdiv(rows, tr)
    blocks_per_split = pl.cdiv(total_blocks, nsplit)

    def in_map(c, i):
        b = c * blocks_per_split + i
        # Clamp fully out-of-range block indices onto the last real block; the
        # kernel's masked path zeroes their contribution.
        return (jnp.minimum(b, total_blocks - 1), 0)

    kernel = functools.partial(
        _mse_partial_kernel, rows=rows, tile_rows=tr, acc_rows=acc_rows,
        blocks_per_split=blocks_per_split)

    cost = pl.CostEstimate(
        flops=3 * kernel_elems,
        transcendentals=0,
        bytes_accessed=2 * kernel_elems * itemsize
        + nsplit * acc_rows * LANES * 4)

    partials = pl.pallas_call(
        kernel,
        out_shape=jax.ShapeDtypeStruct((nsplit, acc_rows, LANES), jnp.float32),
        grid=(nsplit, blocks_per_split),
        in_specs=[
            pl.BlockSpec((tr, LANES), in_map),
            pl.BlockSpec((tr, LANES), in_map),
        ],
        # Same output block across the inner (reduction) axis -> resident
        # per-split accumulator; one (acc_rows, 128) slab per split.
        out_specs=pl.BlockSpec((1, acc_rows, LANES), lambda c, i: (c, 0, 0)),
        compiler_params=pltpu.CompilerParams(
            dimension_semantics=("parallel", "arbitrary"),
            # 48 MiB: plenty for 2 inputs x 2 buffers x 4 MiB blocks + scratch,
            # and safely under v7x's 64 MiB physical VMEM.
            vmem_limit_bytes=48 * 1024 * 1024),
        cost_estimate=cost,
    )(x2d, t2d)

    loss = (jnp.sum(partials) + tail_sum) / jnp.float32(n_elems)
    return x, loss


if __name__ == "__main__":
    key = jax.random.PRNGKey(0)
    kx, kt = jax.random.split(key)

    # Small NCHW shapes consistent with the module's forward (feature maps).
    shape = (2, 4, 16, 16)
    x = jax.random.normal(kx, shape, dtype=jnp.float32)
    target = jax.random.normal(kt, shape, dtype=jnp.float32)

    x_out, loss = content_loss(x, target)
    x_out = jax.block_until_ready(x_out)
    loss = jax.block_until_ready(loss)

    ref = jnp.mean((x - target) ** 2)
    assert jnp.allclose(loss, ref, rtol=1e-4, atol=1e-6), (loss, ref)
    assert jnp.array_equal(x_out, x)

    # Non-128-multiple element count: exercises the lane-tail wrapper path and
    # the masked partial-block path.
    shape2 = (2, 3, 17, 23)
    x2 = jax.random.normal(kx, shape2, dtype=jnp.float32)
    t2 = jax.random.normal(kt, shape2, dtype=jnp.float32)
    _, loss2 = content_loss(x2, t2)
    loss2 = jax.block_until_ready(loss2)
    ref2 = jnp.mean((x2 - t2) ** 2)
    assert jnp.allclose(loss2, ref2, rtol=1e-4, atol=1e-6), (loss2, ref2)

    # Larger shape: exercises the wide (256,128) accumulator, the multi-chunk
    # inner loop, the unmasked fast path and a masked partial final block.
    shape3 = (1, 8, 70, 120)
    x3 = jax.random.normal(kx, shape3, dtype=jnp.float32)
    t3 = jax.random.normal(kt, shape3, dtype=jnp.float32)
    _, loss3 = content_loss(x3, t3)
    loss3 = jax.block_until_ready(loss3)
    ref3 = jnp.mean((x3 - t3) ** 2)
    assert jnp.allclose(loss3, ref3, rtol=1e-4, atol=1e-6), (loss3, ref3)

    print("KERNEL_OK")
</pallas_src>

<mosaic_0001>
module attributes {stable_mosaic.version = 11 : i64} {
  func.func @_mse_partial_kernel(%arg0: i32, %arg1: i32, %arg2: memref<16x128xf32, #tpu.memory_space<vmem>>, %arg3: memref<16x128xf32, #tpu.memory_space<vmem>>, %arg4: memref<1x16x128xf32, #tpu.memory_space<vmem>>) attributes {dimension_semantics = [#tpu.dimension_semantics<parallel>, #tpu.dimension_semantics<arbitrary>], iteration_bounds = array<i64: 1, 1>, scalar_prefetch = 0 : i64, scratch_operands = 0 : i64, tpu.core_type = #tpu.core_type<tc>, window_params = [{transform_indices = @transform_0, window_bounds = array<i64: 16, 128>}, {transform_indices = @transform_1, window_bounds = array<i64: 16, 128>}, {transform_indices = @transform_2, window_bounds = array<i64: 1, 16, 128>}]} {
    %c0_i32 = arith.constant 0 : i32
    %0 = arith.cmpi eq, %arg1, %c0_i32 : i32
    %1 = arith.extui %0 : i1 to i32
    %c0_i32_0 = arith.constant 0 : i32
    %2 = arith.cmpi ne, %1, %c0_i32_0 : i32
    scf.if %2 {
      %cst = arith.constant 0.000000e+00 : f32
      %14 = vector.broadcast %cst : f32 to vector<1x16x128xf32>
      %c0 = arith.constant 0 : index
      %c0_7 = arith.constant 0 : index
      %c0_8 = arith.constant 0 : index
      %15 = vector.load %arg4[%c0, %c0_7, %c0_8] : memref<1x16x128xf32, #tpu.memory_space<vmem>>, vector<1x16x128xf32>
      tpu.vector_store %arg4[%c0, %c0_7, %c0_8], %14 {strides = array<i32>} : memref<1x16x128xf32, #tpu.memory_space<vmem>>, vector<1x16x128xf32>,
    } else {
    }
    %c1_i32 = arith.constant 1 : i32
    %3 = arith.muli %arg0, %c1_i32 : i32
    %4 = arith.addi %3, %arg1 : i32
    %c16_i32 = arith.constant 16 : i32
    %5 = arith.muli %4, %c16_i32 : i32
    %c16_i32_1 = arith.constant 16 : i32
    %6 = arith.addi %5, %c16_i32_1 : i32
    %c16_i32_2 = arith.constant 16 : i32
    %7 = arith.cmpi sle, %6, %c16_i32_2 : i32
    %8 = arith.extui %7 : i1 to i32
    %c0_i32_3 = arith.constant 0 : i32
    %9 = arith.cmpi ne, %8, %c0_i32_3 : i32
    scf.if %9 {
      %c0 = arith.constant 0 : index
      %c0_7 = arith.constant 0 : index
      %14 = vector.load %arg2[%c0, %c0_7] : memref<16x128xf32, #tpu.memory_space<vmem>>, vector<16x128xf32>
      %c0_8 = arith.constant 0 : index
      %c0_9 = arith.constant 0 : index
      %15 = vector.load %arg3[%c0_8, %c0_9] : memref<16x128xf32, #tpu.memory_space<vmem>>, vector<16x128xf32>
      %16 = arith.subf %14, %15 : vector<16x128xf32>
      %c0_10 = arith.constant 0 : index
      %c0_11 = arith.constant 0 : index
      %c0_12 = arith.constant 0 : index
      %17 = vector.load %arg4[%c0_10, %c0_11, %c0_12] : memref<1x16x128xf32, #tpu.memory_space<vmem>>, vector<1x16x128xf32>
      %18 = arith.mulf %16, %16 : vector<16x128xf32>
      %19 = vector.shape_cast %18 : vector<16x128xf32> to vector<1x16x128xf32>
      %20 = arith.addf %17, %19 : vector<1x16x128xf32>
      %c0_13 = arith.constant 0 : index
      %c0_14 = arith.constant 0 : index
      %c0_15 = arith.constant 0 : index
      %21 = vector.load %arg4[%c0_13, %c0_14, %c0_15] : memref<1x16x128xf32, #tpu.memory_space<vmem>>, vector<1x16x128xf32>
      tpu.vector_store %arg4[%c0_13, %c0_14, %c0_15], %20 {strides = array<i32>} : memref<1x16x128xf32, #tpu.memory_space<vmem>>, vector<1x16x128xf32>,
    } else {
    }
    %c16_i32_4 = arith.constant 16 : i32
    %10 = arith.addi %5, %c16_i32_4 : i32
    %c16_i32_5 = arith.constant 16 : i32
    %11 = arith.cmpi sgt, %10, %c16_i32_5 : i32
    %12 = arith.extui %11 : i1 to i32
    %c0_i32_6 = arith.constant 0 : i32
    %13 = arith.cmpi ne, %12, %c0_i32_6 : i32
    scf.if %13 {
      %c0 = arith.constant 0 : index
      %c0_7 = arith.constant 0 : index
      %14 = vector.load %arg2[%c0, %c0_7] : memref<16x128xf32, #tpu.memory_space<vmem>>, vector<16x128xf32>
      %c0_8 = arith.constant 0 : index
      %c0_9 = arith.constant 0 : index
      %15 = vector.load %arg3[%c0_8, %c0_9] : memref<16x128xf32, #tpu.memory_space<vmem>>, vector<16x128xf32>
      %16 = arith.subf %14, %15 : vector<16x128xf32>
      %c0_i32_10 = arith.constant 0 : i32
      %17 = arith.addi %5, %c0_i32_10 : i32
      %18 = tpu.iota {dimensions = array<i32: 0>} : vector<16x128xi32>
      %19 = vector.broadcast %17 : i32 to vector<16x128xi32>
      %20 = arith.addi %19, %18 : vector<16x128xi32>
      %c16_i32_11 = arith.constant 16 : i32
      %21 = vector.broadcast %c16_i32_11 : i32 to vector<16x128xi32>
      %22 = arith.cmpi slt, %20, %21 : vector<16x128xi32>
      %cst = arith.constant 0.000000e+00 : f32
      %23 = vector.broadcast %cst : f32 to vector<16x128xf32>
      %24 = arith.select %22, %16, %23 : vector<16x128xi1>, vector<16x128xf32>
      %c0_12 = arith.constant 0 : index
      %c0_13 = arith.constant 0 : index
      %c0_14 = arith.constant 0 : index
      %25 = vector.load %arg4[%c0_12, %c0_13, %c0_14] : memref<1x16x128xf32, #tpu.memory_space<vmem>>, vector<1x16x128xf32>
      %26 = arith.mulf %24, %24 : vector<16x128xf32>
      %27 = vector.shape_cast %26 : vector<16x128xf32> to vector<1x16x128xf32>
      %28 = arith.addf %25, %27 : vector<1x16x128xf32>
      %c0_15 = arith.constant 0 : index
      %c0_16 = arith.constant 0 : index
      %c0_17 = arith.constant 0 : index
      %29 = vector.load %arg4[%c0_15, %c0_16, %c0_17] : memref<1x16x128xf32, #tpu.memory_space<vmem>>, vector<1x16x128xf32>
      tpu.vector_store %arg4[%c0_15, %c0_16, %c0_17], %28 {strides = array<i32>} : memref<1x16x128xf32, #tpu.memory_space<vmem>>, vector<1x16x128xf32>,
    } else {
    }
    return
  }
  func.func @transform_0(%arg0: i32, %arg1: i32) -> (i32, i32) {
    %c1_i32 = arith.constant 1 : i32
    %0 = arith.muli %arg0, %c1_i32 : i32
    %1 = arith.addi %0, %arg1 : i32
    %c0_i32 = arith.constant 0 : i32
    %2 = arith.minsi %1, %c0_i32 : i32
    %c0_i32_0 = arith.constant 0 : i32
    %c0_i32_1 = arith.constant 0 : i32
    return %2, %c0_i32_0 : i32, i32
  }
  func.func @transform_1(%arg0: i32, %arg1: i32) -> (i32, i32) {
    %c1_i32 = arith.constant 1 : i32
    %0 = arith.muli %arg0, %c1_i32 : i32
    %1 = arith.addi %0, %arg1 : i32
    %c0_i32 = arith.constant 0 : i32
    %2 = arith.minsi %1, %c0_i32 : i32
    %c0_i32_0 = arith.constant 0 : i32
    %c0_i32_1 = arith.constant 0 : i32
    return %2, %c0_i32_0 : i32, i32
  }
  func.func @transform_2(%arg0: i32, %arg1: i32) -> (i32, i32, i32) {
    %c0_i32 = arith.constant 0 : i32
    %c0_i32_0 = arith.constant 0 : i32
    %c0_i32_1 = arith.constant 0 : i32
    return %arg0, %c0_i32, %c0_i32_0 : i32, i32, i32
  }
}

</mosaic_0001>

<llo_original>
// kernel: tpu_custom_call.1
$region0: #{tpu_custom_call.1}
  #allocation0 [shape = 'u32[]', space=smem, size = 0x4, offset = 0x4, fixed_abs, tag = 'smem constant byte address 0x4 - core index']
  #allocation1 [shape = 'u32[144,128]{1,0:T(1,128)}', space=vmem, size = 0x12000, scoped, tag = 'internal scratch']
  %s0 = inlined_call_operand.hbm [shape: f32[16,128], index: 0, kind: input, shape index: {}]
  %s1 = inlined_call_operand.hbm [shape: f32[16,128], index: 1, kind: input, shape index: {}]
  %s2 = inlined_call_operand.hbm [shape: f32[1,16,128], index: 2, kind: output, shape index: {}]
  %s3 = sld [smem:[#allocation0]]
  $region38: #{tpu_custom_call.1} parent=0
    _
  %s5 = ssub.s32 1, %s3
  %s6 = scalar_select 0, %s5, %s3
  $region1: #{tpu_custom_call.1} parent=0
    #allocation2 [shape = 'u8[8192]{0}', space=vmem, size = 0x2000, scoped, tag = 'input window, operand 0, single buffered']
    #allocation3 [shape = 's32[1]{0}', space=sflag, size = 0x4, scoped, tag = 'scoped memory for tpu_custom_call.1']
    #allocation4 [shape = 's32[1]{0}', space=sflag, size = 0x4, scoped, tag = 'scoped memory for tpu_custom_call.1']
    #allocation5 [shape = 'u8[8192]{0}', space=vmem, size = 0x2000, scoped, tag = 'input window, operand 1, single buffered']
    #allocation6 [shape = 's32[1]{0}', space=sflag, size = 0x4, scoped, tag = 'scoped memory for tpu_custom_call.1']
    #allocation7 [shape = 'u8[8192]{0}', space=vmem, size = 0x2000, scoped, tag = 'output window, operand 0, single buffered']
    %7 = vsyncpa [#allocation3], 0
    %8 = vsyncpa [#allocation6], 0
    %9 = vsyncpa [#allocation4], 0
    // Predicated region
    $region2: #{tpu_custom_call.1} parent=1 // pred_check
      _
    $region3: #{tpu_custom_call.1} parent=1 // pred_check_branch
      %11 = sbr.rel (0) target = $region5
    $region4: #{tpu_custom_call.1} parent=1 // pred_region
      %s12 = sadd.s32 0, 0
      %p13 = scmp.lt.s32.totalorder %s12, 0
      %s14 = scalar_select %p13, %s12, 0
      %s15 = smul.u32 2, %s14
      %s17 = ssub.s32 256, 256
      %18 = vsyncadd [#allocation3], %s17
      %s19 = smul.addr %s15, 128
      %s20 = scalar_lea.hbm %s0, %s19
      %s21 = sshll.u32 [#allocation2], 4
      %s22 = int_to_ptr.vmem [resolvable:$true] %s21
      %27 = dma.hbm_to_vmem [thread:$0]  %s20, 256, %s22, [#allocation3], 128, 128, 8
    $region5: #{tpu_custom_call.1} parent=1 // pred_fallthru
      _
    // Predicated region
    $region6: #{tpu_custom_call.1} parent=1 // pred_check
      _
    $region7: #{tpu_custom_call.1} parent=1 // pred_check_branch
      %29 = sbr.rel (0) target = $region9
    $region8: #{tpu_custom_call.1} parent=1 // pred_region
      %s30 = sadd.s32 0, 0
      %p31 = scmp.lt.s32.totalorder %s30, 0
      %s32 = scalar_select %p31, %s30, 0
      %s33 = smul.u32 2, %s32
      %s35 = ssub.s32 256, 256
      %36 = vsyncadd [#allocation6], %s35
      %s37 = smul.addr %s33, 128
      %s38 = scalar_lea.hbm %s1, %s37
      %s39 = sshll.u32 [#allocation5], 4
      %s40 = int_to_ptr.vmem [resolvable:$true] %s39
      %45 = dma.hbm_to_vmem [thread:$0]  %s38, 256, %s40, [#allocation6], 128, 128, 8
    $region9: #{tpu_custom_call.1} parent=1 // pred_fallthru
      _
    // Predicated region
    $region10: #{tpu_custom_call.1} parent=1 // pred_check
      _
    $region11: #{tpu_custom_call.1} parent=1 // pred_check_branch
      %47 = sbr.rel (0) target = $region13
    $region12: #{tpu_custom_call.1} parent=1 // pred_region
      %48 = dma.done [#allocation3], 256
    $region13: #{tpu_custom_call.1} parent=1 // pred_fallthru
      _
    // Predicated region
    $region14: #{tpu_custom_call.1} parent=1 // pred_check
      _
    $region15: #{tpu_custom_call.1} parent=1 // pred_check_branch
      %50 = sbr.rel (0) target = $region17
    $region16: #{tpu_custom_call.1} parent=1 // pred_region
      %51 = dma.done [#allocation6], 256
    $region17: #{tpu_custom_call.1} parent=1 // pred_fallthru
      _
    %s52 = sadd.s32 0, 0
    %p53 = scmp.lt.s32.totalorder %s52, 0
    %s54 = scalar_select %p53, %s52, 0
    %s55 = smul.u32 2, %s54
    %s56 = sadd.s32 0, 0
    %p57 = scmp.lt.s32.totalorder %s56, 0
    %s58 = scalar_select %p57, %s56, 0
    %s59 = smul.u32 2, %s58
    %p60 = scmp.eq.s32.totalorder 0, 0
    // Predicated region
    $region18: #{tpu_custom_call.1} parent=1 // pred_check
      %p61 = pneg %p60
    $region19: #{tpu_custom_call.1} parent=1 // pred_check_branch
      %63 = sbr.rel (%p61) target = $region21
    $region20: #{tpu_custom_call.1} parent=1 // pred_region
      %64 = vst [vmem:[#allocation7] sm:$0xff] 0.0
      %65 = vst [vmem:[#allocation7 + $0x8] sm:$0xff] 0.0
    $region21: #{tpu_custom_call.1} parent=1 // pred_fallthru
      _
    %s66 = sadd.s32 0, 0
    %s67 = smul.u32 %s66, 16
    %s68 = sadd.s32 %s67, 16
    %p69 = scmp.le.s32.totalorder %s68, 16
    // Predicated region
    $region22: #{tpu_custom_call.1} parent=1 // pred_check
      %p70 = pneg %p69
    $region23: #{tpu_custom_call.1} parent=1 // pred_check_branch
      %72 = sbr.rel (%p70) target = $region25
    $region24: #{tpu_custom_call.1} parent=1 // pred_region
      %v73 = vld [vmem:[#allocation2] sm:$0xff]
      %v74 = vld [vmem:[#allocation2 + $0x8] sm:$0xff]
      %v75 = vld [vmem:[#allocation5] sm:$0xff]
      %v76 = vld [vmem:[#allocation5 + $0x8] sm:$0xff]
      %v77 = vsub.f32 %v73, %v75
      %v78 = vsub.f32 %v74, %v76
      %v79 = vld [vmem:[#allocation7] sm:$0xff]
      %v80 = vld [vmem:[#allocation7 + $0x8] sm:$0xff]
      %v81 = vmul.f32 %v77, %v77
      %v82 = vmul.f32 %v78, %v78
      %v83 = vadd.f32 %v79, %v81
      %v84 = vadd.f32 %v80, %v82
      %85 = vst [vmem:[#allocation7] sm:$0xff] %v83
      %86 = vst [vmem:[#allocation7 + $0x8] sm:$0xff] %v84
    $region25: #{tpu_custom_call.1} parent=1 // pred_fallthru
      _
    %p87 = scmp.gt.s32.totalorder %s68, 16
    // Predicated region
    $region26: #{tpu_custom_call.1} parent=1 // pred_check
      %p88 = pneg %p87
    $region27: #{tpu_custom_call.1} parent=1 // pred_check_branch
      %90 = sbr.rel (%p88) target = $region29
    $region28: #{tpu_custom_call.1} parent=1 // pred_region
      %v91 = vld [vmem:[#allocation2] sm:$0xff]
      %v92 = vld [vmem:[#allocation2 + $0x8] sm:$0xff]
      %v93 = vld [vmem:[#allocation5] sm:$0xff]
      %v94 = vld [vmem:[#allocation5 + $0x8] sm:$0xff]
      %v95 = vsub.f32 %v91, %v93
      %v96 = vsub.f32 %v92, %v94
      %v97 = vlaneseq
      %v98 = vshrl.u32 %v97, 7
      %v99 = vadd.s32 %v98, 8
      %v100 = vstv %s67
      %v101 = vadd.s32 %v100, %v98
      %v102 = vadd.s32 %v100, %v99
      %vm103 = vcmp.lt.s32.totalorder %v101, 16
      %vm104 = vcmp.lt.s32.totalorder %v102, 16
      %v105 = vsel %vm103, %v95, 0.0
      %v106 = vsel %vm104, %v96, 0.0
      %v107 = vld [vmem:[#allocation7] sm:$0xff]
      %v108 = vld [vmem:[#allocation7 + $0x8] sm:$0xff]
      %v109 = vmul.f32 %v105, %v105
      %v110 = vmul.f32 %v106, %v106
      %v111 = vadd.f32 %v107, %v109
      %v112 = vadd.f32 %v108, %v110
      %113 = vst [vmem:[#allocation7] sm:$0xff] %v111
      %114 = vst [vmem:[#allocation7 + $0x8] sm:$0xff] %v112
    $region29: #{tpu_custom_call.1} parent=1 // pred_fallthru
      _
    // Predicated region
    $region30: #{tpu_custom_call.1} parent=1 // pred_check
      _
    $region31: #{tpu_custom_call.1} parent=1 // pred_check_branch
      %116 = sbr.rel (0) target = $region33
    $region32: #{tpu_custom_call.1} parent=1 // pred_region
      %s118 = ssub.s32 256, 256
      %119 = vsyncadd [#allocation4], %s118
      %s120 = sshll.u32 [#allocation7], 4
      %s121 = int_to_ptr.vmem [resolvable:$true] %s120
      %126 = dma.vmem_to_hbm [thread:$0]  %s121, 256, %s2, [#allocation4], 128, 128, 8
    $region33: #{tpu_custom_call.1} parent=1 // pred_fallthru
      _
    // Predicated region
    $region34: #{tpu_custom_call.1} parent=1 // pred_check
      _
    $region35: #{tpu_custom_call.1} parent=1 // pred_check_branch
      %128 = sbr.rel (0) target = $region37
    $region36: #{tpu_custom_call.1} parent=1 // pred_region
      %129 = dma.done [#allocation4], 256
    $region37: #{tpu_custom_call.1} parent=1 // pred_fallthru
      _
    %130 = vsyncpa [#allocation3], 1
    %131 = vsyncpa [#allocation6], 1
    %132 = vsyncpa [#allocation4], 1

</llo_original>
